<compile_context>
chip_gen: v7x
topology: tpu7x:2x2x1
jax: 0.10.0
libtpu: 0.0.40
codegen_flags: <defaults>
</compile_context>

<pallas_src>
import numpy as np
import jax
import jax.numpy as jnp
from jax.experimental import pallas as pl
from jax.experimental.pallas import tpu as pltpu


# ---------------------------------------------------------------------------
# Synthetic, deterministic stand-in for mutils' RegionCellCombination tables.
# TODO(synk): real class-code tables ship with mutils; only the codes used by
#             the evaluator are needed here and are defined deterministically.
class RegionCellCombination:
    REGION_CODES = {'EXCLUDE': 0, 'TUMOR': 1, 'STROMA': 2, 'TILS': 3,
                    'NORMAL': 4, 'OTHER': 5}
    NUCLEUS_CODES = {'EXCLUDE': 0, 'CancerEpithelium': 1, 'StromalCellNOS': 2,
                     'TILsCell': 3, 'ActiveTILsCell': 4, 'OtherCell': 5,
                     'BACKGROUND': 6}
    RREGION_CODES = {v: k for k, v in REGION_CODES.items() if v > 0}
    RNUCLEUS_CODES = {v: k for k, v in NUCLEUS_CODES.items() if v > 0}


HDR = 2         # [exclude_count, overall_pixel_match]
PER_CLASS = 3   # [segm_intersect, psum, tsum]


def _row_tiling(rows, cap=1024):
    """Choose (row_tile, n_row_tiles).  Row tile <= cap, multiple of 8 (or the
    full extent).  Caller pads rows up to row_tile * n_row_tiles, so per-block
    VMEM is bounded on every generation (v5e/v6e 128 MiB, v7x 64 MiB)."""
    if rows <= cap:
        return rows, 1
    n_rt = -(-rows // cap)
    tr = -(-rows // n_rt)
    tr = -(-tr // 8) * 8
    return tr, n_rt


def _also_tuple(num_cls, misclassif):
    """Acceptable-misclassification lumping map as a static Python tuple."""
    also = [0] * (num_cls + 1)
    for pair in misclassif:
        if pair[1] is not None and 1 <= pair[0] <= num_cls:
            also[pair[0]] = int(pair[1])
        # TODO(synk): the change_to=None branch (zero out a class entirely) of
        #             get_stats_for_all_classes is not wired into the kernel.
    return tuple(also)


def _stats_layout(num_cls, also):
    """Stat-vector length and per-class offsets of the extra CTA counts."""
    extra_idx = {}
    s = HDR + PER_CLASS * num_cls
    for cls in range(1, num_cls + 1):
        if also[cls] > 0:
            extra_idx[cls] = s
            s += 2           # [pred_count, true_count] for lumped classes only
    return s, extra_idx


# ---------------------------------------------------------------------------
# Pallas kernel 1: fused channel-argmax + per-class mask statistics for one or
# more logits tensors sharing a single true mask.  One (image, outer, row-tile)
# grid point; stats accumulate into a lane-dense (n_logits*S, 128) output block
# that stays VMEM-resident across the (arbitrary) row-tile axis.
def _make_stats_kernel(n_ch, tr, num_cls, also, n_logits):
    s_len, _ = _stats_layout(num_cls, also)

    def kernel(*refs):
        logits_refs = refs[:n_logits]          # each: VMEM f32[n_ch, tr, 128]
        true_ref = refs[n_logits]              # VMEM i32[tr, 128]
        out_ref = refs[n_logits + 1]           # VMEM f32[n_logits*s_len, 128]

        @pl.when(pl.program_id(2) == 0)
        def _init():
            out_ref[...] = jnp.zeros_like(out_ref)

        def rsum(b):
            # sublane-only reduce; the final 128-lane reduce happens host-side.
            return jnp.sum(b.astype(jnp.float32), axis=0, keepdims=True)

        def acc(off, idx, v):
            i = off + idx
            out_ref[i:i + 1, :] = out_ref[i:i + 1, :] + v

        # ---- true-side work: computed ONCE, shared by all logits blocks ----
        true = true_ref[...]
        excl = true == 0                          # exclusion (and any padding)
        excl_s = rsum(excl)                       # exclude_count (incl. pad)
        t_eq = [None] + [true == cls for cls in range(1, num_cls + 1)]
        t_s = [None] + [rsum(t_eq[c]) for c in range(1, num_cls + 1)]
        tm_s = [None] * (num_cls + 1)             # lumped tsum per class
        for cls in range(1, num_cls + 1):
            a = also[cls]
            tm_s[cls] = rsum(jnp.logical_or(t_eq[cls], t_eq[a])) if a > 0 \
                else t_s[cls]

        # ---- per-logits work ----
        for li, lref in enumerate(logits_refs):
            off = li * s_len

            # torch.argmax(logits, dim=1) + 1  (first max wins, like torch)
            best_val = lref[0]
            best_idx = jnp.zeros((tr, 128), jnp.int32)
            for c in range(1, n_ch):
                v = lref[c]
                upd = v > best_val
                best_val = jnp.where(upd, v, best_val)
                best_idx = jnp.where(upd, jnp.int32(c), best_idx)
            pred = best_idx + 1                   # values in 1..n_ch
            pred_z = jnp.where(excl, 0, pred)

            acc(off, 0, excl_s)                   # exclude_count
            acc(off, 1, rsum(pred_z == true))     # overall pixel match

            p_eq = [None] + [pred_z == cls for cls in range(1, num_cls + 1)]
            lumped = []
            for cls in range(1, num_cls + 1):
                a = also[cls]                     # compile-time constant
                if a > 0:
                    pm = jnp.logical_or(p_eq[cls], p_eq[a])
                    tm = jnp.logical_or(t_eq[cls], t_eq[a])
                    lumped.append(cls)            # unlumped counts for CTA
                else:
                    pm, tm = p_eq[cls], t_eq[cls]
                base = HDR + PER_CLASS * (cls - 1)
                acc(off, base + 0, rsum(jnp.logical_and(pm, tm)))  # segm_isect
                acc(off, base + 1, rsum(pm))                       # psum
                acc(off, base + 2, tm_s[cls])                      # tsum
                # per-class pixel_intersect is derived host-side:
                #   total - (psum + tsum - 2*segm_intersect)

            ei = HDR + PER_CLASS * num_cls
            for cls in lumped:
                acc(off, ei, rsum(p_eq[cls]))     # pred_count (lumped cls)
                acc(off, ei + 1, t_s[cls])        # true_count (lumped cls)
                ei += 2
    return kernel


def stats_pallas(logits_list, true_mask, also, num_cls, cap=1024):
    """logits_list: list of [N, C, H, W] f32 sharing one true_mask [N, H, W].

    Returns (raw device output [N, n_outer, n_logits*S, 128] f32, S, pad_pixels).
    The caller reduces over (outer, lane) axes host-side in float64.
    """
    N, C, H, W = logits_list[0].shape
    hw = H * W
    rows = -(-hw // 128)
    tr, n_rt = _row_tiling(rows, cap)
    rows_p = tr * n_rt
    pad = rows_p * 128 - hw

    def flat(a, ch):
        a = a.reshape((N, ch, hw) if ch else (N, hw))
        if pad:
            # Pad with 0 (== excluded): padded pixels contribute nothing to any
            # class stat and cancel exactly in the overall-match/excount pair.
            # TODO(synk): an in-kernel broadcasted-iota tail mask would avoid
            #             this extra HBM copy for non-128-multiple images.
            widths = ((0, 0), (0, 0), (0, pad)) if ch else ((0, 0), (0, pad))
            a = jnp.pad(a, widths)
        return a.reshape((N, ch, rows_p, 128) if ch else (N, rows_p, 128))

    lgs = [flat(l.astype(jnp.float32), C) for l in logits_list]
    tm = flat(true_mask.astype(jnp.int32), 0)

    s_len, _ = _stats_layout(num_cls, also)
    s_tot = s_len * len(logits_list)

    # Megacore-friendly split of the row axis: (outer parallel, inner arbitrary)
    n_outer = 2 if (n_rt >= 2 and n_rt % 2 == 0) else 1
    n_inner = n_rt // n_outer

    in_specs = []
    for _ in range(len(logits_list)):
        in_specs.append(pl.BlockSpec((None, C, tr, 128),
                                     lambda n, o, r: (n, 0, o * n_inner + r, 0)))
    in_specs.append(pl.BlockSpec((None, tr, 128),
                                 lambda n, o, r: (n, o * n_inner + r, 0)))

    out = pl.pallas_call(
        _make_stats_kernel(C, tr, num_cls, also, len(logits_list)),
        grid=(N, n_outer, n_inner),
        in_specs=in_specs,
        out_specs=pl.BlockSpec((None, None, s_tot, 128),
                               lambda n, o, r: (n, o, 0, 0)),
        out_shape=jax.ShapeDtypeStruct((N, n_outer, s_tot, 128), jnp.float32),
        compiler_params=pltpu.CompilerParams(
            dimension_semantics=("parallel", "parallel", "arbitrary")),
    )(*lgs, tm)

    return out, s_len, pad


# ---------------------------------------------------------------------------
# Pallas kernel 2: MuTILsTransform per-channel RGB normalization.
# Constants (mean, 1/std) baked in; multiply+add instead of subtract+divide;
# lane-dense blocks; one call for the whole concatenated batch.
def _make_normalize_kernel(n_ch, scale, bias):
    def kernel(x_ref, o_ref):
        for c in range(n_ch):
            o_ref[c] = x_ref[c] * scale[c] + bias[c]
    return kernel


def normalize_pallas(img, mean, std, cap=1024):
    """img: [N, C, H, W] f32 (NCHW); mean/std: python lists of length C."""
    N, C, H, W = img.shape
    hw = H * W
    rows = -(-hw // 128)
    tr, n_rt = _row_tiling(rows, cap)
    rows_p = tr * n_rt
    pad = rows_p * 128 - hw

    x = img.reshape(N, C, hw)
    if pad:
        x = jnp.pad(x, ((0, 0), (0, 0), (0, pad)))
    x = x.reshape(N, C, rows_p, 128)

    scale = tuple(float(1.0 / s) for s in std)
    bias = tuple(float(-m / s) for m, s in zip(mean, std))

    out = pl.pallas_call(
        _make_normalize_kernel(C, scale, bias),
        grid=(N, n_rt),
        in_specs=[pl.BlockSpec((None, C, tr, 128), lambda n, r: (n, 0, r, 0))],
        out_specs=pl.BlockSpec((None, C, tr, 128), lambda n, r: (n, 0, r, 0)),
        out_shape=jax.ShapeDtypeStruct((N, C, rows_p, 128), jnp.float32),
        compiler_params=pltpu.CompilerParams(
            dimension_semantics=("parallel", "parallel")),
    )(x)

    out = out.reshape(N, C, rows_p * 128)
    if pad:
        out = out[:, :, :hw]
    return out.reshape(N, C, H, W)


# ---------------------------------------------------------------------------
# Evaluator (pure orchestration around the two kernels).
class MuTILsEvaluatorPallas:
    """Pallas/JAX port of MuTILsEvaluator.forward (metric evaluation)."""

    def __init__(self):
        rcc = RegionCellCombination
        self.nucleus_bckg_code = rcc.NUCLEUS_CODES['BACKGROUND']
        self.rregion_codes = rcc.RREGION_CODES
        self.rnucleus_codes = rcc.RNUCLEUS_CODES
        self.rtils_code = rcc.REGION_CODES['TILS']
        self.rstroma_code = rcc.REGION_CODES['STROMA']
        self.ntils_code1 = rcc.NUCLEUS_CODES['TILsCell']
        self.ntils_code2 = rcc.NUCLEUS_CODES['ActiveTILsCell']
        self.acceptable_region_misclassif = [
            (rcc.REGION_CODES['STROMA'], rcc.REGION_CODES['TILS'])]
        self.acceptable_nucleus_misclassif = []
        self.image_mean = [0.485, 0.456, 0.406]
        self.image_std = [0.229, 0.224, 0.225]
        self.ignore_ks = ['idx', 'roiname']
        self.raw_outputs = []   # device outputs of the stats kernels

    # ---- MuTILsTransform ----
    def transform(self, data_list):
        data_new = {k: [] for k in data_list[0].keys()}
        for roi in data_list:
            for k, v in roi.items():
                data_new[k].append(v)
        data = {k: v for k, v in data_new.items() if k not in self.ignore_ks}
        carryover = {k: v for k, v in data_new.items() if k in self.ignore_ks}
        data = {k: jnp.concatenate(v, axis=0) for k, v in data.items()}
        # normalize once per tensor on the concatenated batch (same result as
        # per-image normalize followed by concat).
        for k in ['highres_rgb', 'lowres_rgb']:
            if k in data:
                data[k] = normalize_pallas(data[k], self.image_mean, self.image_std)
        data.update(carryover)
        return data

    @staticmethod
    def parse_hpf_mask(mask, bounds, roidxs):
        # TODO(synk): could be folded into the stats kernel with scalar-prefetch
        #             (PrefetchScalarGridSpec + pl.ds crop DMA); kept host-side
        #             slicing to match the original module exactly.
        bounds = np.asarray(bounds)
        roidxs = np.asarray(roidxs)
        hpf = []
        for hno in range(bounds.shape[0]):
            x0, y0, x1, y1 = [int(j) for j in bounds[hno]]
            r = int(roidxs[hno])
            hpf.append(mask[r:r + 1, :, y0:y1, x0:x1])
        return jnp.concatenate(hpf, axis=0)

    @staticmethod
    def _compose(prefix, agg, rclsmap, num_cls, hw_real, n_imgs, pad_per_img):
        excount_k = float(agg[0])                        # includes padding
        excount = excount_k - pad_per_img * n_imgs       # real exclude count
        total = float(hw_real * n_imgs - excount)
        d = {f'{prefix}_OVERALL-pixel_intersect': float(agg[1] - excount_k),
             f'{prefix}_OVERALL-pixel_count': total}
        for cls in range(1, num_cls + 1):
            base = HDR + PER_CLASS * (cls - 1)
            seg_i = float(agg[base + 0])
            psum = float(agg[base + 1])
            tsum = float(agg[base + 2])
            nm = rclsmap[cls]
            d[f'{prefix}_{nm}-pixel_intersect'] = total - (psum + tsum - 2.0 * seg_i)
            d[f'{prefix}_{nm}-pixel_count'] = total
            d[f'{prefix}_{nm}-segm_intersect'] = seg_i
            d[f'{prefix}_{nm}-segm_sums'] = psum + tsum
        return d

    @staticmethod
    def _counts(agg, cls, also, extra_idx):
        """(pred_count, true_count) for class `cls` (exclusion applied to pred)."""
        if also[cls] > 0:
            ei = extra_idx[cls]
            return float(agg[ei]), float(agg[ei + 1])
        base = HDR + PER_CLASS * (cls - 1)
        return float(agg[base + 1]), float(agg[base + 2])   # psum, tsum

    def __call__(self, inference, truth):
        truth = self.transform(truth)
        truth['highres_mask'] = truth['highres_mask'][:, 0:2, :, :]
        hpf_mask = self.parse_hpf_mask(truth['highres_mask'],
                                       inference['hpf_hres_bounds'],
                                       inference['hpf_roidx'])
        batch_size = truth['highres_mask'].shape[0]
        n_hpfs = inference['hpf_region_logits'].shape[0]
        topk = n_hpfs // batch_size
        nreg = max(self.rregion_codes.keys())
        nnuc = max(self.rnucleus_codes.keys())
        also_reg = _also_tuple(nreg, self.acceptable_region_misclassif)
        also_nuc = _also_tuple(nnuc, self.acceptable_nucleus_misclassif)
        _, reg_extra = _stats_layout(nreg, also_reg)
        _, nuc_extra = _stats_layout(nnuc, also_nuc)

        roi_rtrue = truth['lowres_mask'][:, 0]
        hpf_rtrue = hpf_mask[:, 0]
        hpf_ntrue = hpf_mask[:, 1]

        # ---- 3 batched kernel launches (nuclei + pre-nuclei fused) ----
        roi_dev, _, roi_pad = stats_pallas(
            [inference['roi_region_logits']], roi_rtrue, also_reg, nreg)
        hpfr_dev, _, hpf_pad = stats_pallas(
            [inference['hpf_region_logits']], hpf_rtrue, also_reg, nreg)
        nuc_dev, s_nuc, _ = stats_pallas(
            [inference['hpf_nuclei'], inference['hpf_nuclei_pre']],
            hpf_ntrue, also_nuc, nnuc)
        self.raw_outputs = [roi_dev, hpfr_dev, nuc_dev]

        # ---- single blocking device -> host transfer; exact f64 reduction ----
        roi_h, hpfr_h, nuc_h = [
            np.asarray(a, np.float64).sum(axis=(1, -1))
            for a in jax.device_get((roi_dev, hpfr_dev, nuc_dev))]
        hpfn_h = nuc_h[:, :s_nuc]
        hpfpn_h = nuc_h[:, s_nuc:]

        hw_roi = int(np.prod(roi_rtrue.shape[1:]))
        hw_hpf = int(np.prod(hpf_rtrue.shape[1:]))

        all_stats = []
        for roidx in range(batch_size):
            stats = {'epoch': float('nan'), 'slide': float('nan'),
                     'roiname': truth['roiname'][roidx]}
            hs, he = roidx * topk, (roidx + 1) * topk

            roi_agg = roi_h[roidx]
            hpf_ragg = hpfr_h[hs:he].sum(axis=0)
            hpf_nagg = hpfn_h[hs:he].sum(axis=0)
            hpf_pnagg = hpfpn_h[hs:he].sum(axis=0)

            stats.update(self._compose('roi-regions', roi_agg, self.rregion_codes,
                                       nreg, hw_roi, 1, roi_pad))
            stats.update(self._compose('hpf-nuclei', hpf_nagg, self.rnucleus_codes,
                                       nnuc, hw_hpf, topk, hpf_pad))
            stats.update(self._compose('hpf-prenuclei', hpf_pnagg, self.rnucleus_codes,
                                       nnuc, hw_hpf, topk, hpf_pad))

            # --- CTA (TILS) scores ---
            pfx = 'roi-CTA-score'
            tils_p, tils_t = self._counts(roi_agg, self.rtils_code, also_reg, reg_extra)
            strm_p, strm_t = self._counts(roi_agg, self.rstroma_code, also_reg, reg_extra)
            stats[f'{pfx}_numer_true'] = tils_t
            stats[f'{pfx}_denom_true'] = strm_t + tils_t
            stats[f'{pfx}_numer_pred'] = tils_p
            stats[f'{pfx}_denom_pred'] = strm_p + tils_p

            pfx = 'hpf-CTA-score'
            rtils_p, rtils_t = self._counts(hpf_ragg, self.rtils_code, also_reg, reg_extra)
            rstrm_p, rstrm_t = self._counts(hpf_ragg, self.rstroma_code, also_reg, reg_extra)
            n1_p, n1_t = self._counts(hpf_nagg, self.ntils_code1, also_nuc, nuc_extra)
            n2_p, n2_t = self._counts(hpf_nagg, self.ntils_code2, also_nuc, nuc_extra)
            stats[f'{pfx}_numer_true'] = n1_t + n2_t
            stats[f'{pfx}_denom_true'] = rstrm_t + rtils_t
            stats[f'{pfx}_numer_pred'] = n1_p + n2_p
            stats[f'{pfx}_denom_pred'] = rstrm_p + rtils_p

            all_stats.append(stats)
        return all_stats


# ---------------------------------------------------------------------------
# numpy reference (mirrors the torch module semantics) -- correctness check.
def _np_pred_vs_true(pred, true, exclude, isbin):
    excount = float(exclude.sum())
    p = np.where(exclude, 0, pred)
    t = np.where(exclude, 0, true)
    d = {'pixel_intersect': float((p == t).sum() - excount),
         'pixel_count': float(p.size - excount)}
    if not isbin:
        return d
    d['segm_intersect'] = float(((p + t) == 2).sum())
    d['segm_sums'] = float(p.sum() + t.sum())
    return d


def _np_stats_all_classes(pred, true, excl, rclsmap, misclassif, prefix):
    d = {}
    overall = _np_pred_vs_true(pred, true, excl, isbin=False)
    d.update({f'{prefix}_OVERALL-{k}': v for k, v in overall.items()})
    for cls in range(1, max(rclsmap.keys()) + 1):
        pm = (pred == cls).astype(np.int64)
        tm = (true == cls).astype(np.int64)
        for pair in misclassif:
            if cls == pair[0]:
                if pair[1] is not None:
                    pm[pred == pair[1]] = 1
                    tm[true == pair[1]] = 1
                else:
                    pm = tm = 0 * pm
        cs = _np_pred_vs_true(pm, tm, excl, isbin=True)
        d.update({f'{prefix}_{rclsmap[cls]}-{k}': v for k, v in cs.items()})
    return d


def _np_cta(ev, regions, nuclei=None, rexcl=None, nexcl=None):
    reg = np.where(rexcl, 0, regions) if rexcl is not None else regions
    nuc = None
    if nuclei is not None:
        nuc = np.where(nexcl, 0, nuclei) if nexcl is not None else nuclei
    rtils = int((reg == ev.rtils_code).sum())
    rstroma = int((reg == ev.rstroma_code).sum())
    if nuc is None:
        tils = float(rtils)
    else:
        tils = float((nuc == ev.ntils_code1).sum() + (nuc == ev.ntils_code2).sum())
    return tils, float(rstroma + rtils)


def reference_eval(inference, truth_list, ev):
    hm = np.concatenate([np.asarray(r['highres_mask']) for r in truth_list], 0)[:, 0:2]
    lm = np.concatenate([np.asarray(r['lowres_mask']) for r in truth_list], 0)
    bounds = np.asarray(inference['hpf_hres_bounds'])
    roidxs = np.asarray(inference['hpf_roidx'])
    hpf = []
    for h in range(bounds.shape[0]):
        x0, y0, x1, y1 = [int(j) for j in bounds[h]]
        r = int(roidxs[h])
        hpf.append(hm[r:r + 1, :, y0:y1, x0:x1])
    hpf_mask = np.concatenate(hpf, 0)
    rr = np.asarray(inference['roi_region_logits'])
    hr = np.asarray(inference['hpf_region_logits'])
    hn = np.asarray(inference['hpf_nuclei'])
    hpn = np.asarray(inference['hpf_nuclei_pre'])
    B = hm.shape[0]
    topk = hr.shape[0] // B
    out = []
    for roidx in range(B):
        st = {}
        hs, he = roidx * topk, (roidx + 1) * topk
        roi_rpred = np.argmax(rr[roidx:roidx + 1], axis=1) + 1
        roi_rtrue = lm[roidx:roidx + 1, 0]
        roi_rexcl = roi_rtrue == 0
        st.update(_np_stats_all_classes(roi_rpred, roi_rtrue, roi_rexcl,
                                        ev.rregion_codes,
                                        ev.acceptable_region_misclassif,
                                        'roi-regions'))
        hpf_rpred = np.argmax(hr[hs:he], axis=1) + 1
        hpf_rtrue = hpf_mask[hs:he, 0]
        hpf_rexcl = hpf_rtrue == 0
        hpf_npred = np.argmax(hn[hs:he], axis=1) + 1
        hpf_ntrue = hpf_mask[hs:he, 1]
        hpf_nexcl = hpf_ntrue == 0
        st.update(_np_stats_all_classes(hpf_npred, hpf_ntrue, hpf_nexcl,
                                        ev.rnucleus_codes,
                                        ev.acceptable_nucleus_misclassif,
                                        'hpf-nuclei'))
        hpf_pnpred = np.argmax(hpn[hs:he], axis=1) + 1
        st.update(_np_stats_all_classes(hpf_pnpred, hpf_ntrue, hpf_nexcl,
                                        ev.rnucleus_codes,
                                        ev.acceptable_nucleus_misclassif,
                                        'hpf-prenuclei'))
        pfx = 'roi-CTA-score'
        st[f'{pfx}_numer_true'], st[f'{pfx}_denom_true'] = _np_cta(ev, roi_rtrue)
        st[f'{pfx}_numer_pred'], st[f'{pfx}_denom_pred'] = _np_cta(
            ev, roi_rpred, rexcl=roi_rexcl)
        pfx = 'hpf-CTA-score'
        st[f'{pfx}_numer_true'], st[f'{pfx}_denom_true'] = _np_cta(
            ev, hpf_rtrue, nuclei=hpf_ntrue)
        st[f'{pfx}_numer_pred'], st[f'{pfx}_denom_pred'] = _np_cta(
            ev, hpf_rpred, nuclei=hpf_npred, rexcl=hpf_rexcl, nexcl=hpf_nexcl)
        out.append(st)
    return out


# ---------------------------------------------------------------------------
if __name__ == "__main__":
    key = jax.random.PRNGKey(0)
    B, topk = 2, 2
    n_hpfs = B * topk
    NR = max(RegionCellCombination.RREGION_CODES.keys())   # 5 region classes
    NN = max(RegionCellCombination.RNUCLEUS_CODES.keys())  # 6 nucleus classes
    Hl = Wl = 32       # low-res ROI
    Hh = Wh = 64       # high-res ROI
    HPF = 32           # HPF crop size

    ks = jax.random.split(key, 8)
    inference = {
        'roi_region_logits': jax.random.normal(ks[0], (B, NR, Hl, Wl), jnp.float32),
        'hpf_region_logits': jax.random.normal(ks[1], (n_hpfs, NR, HPF, HPF), jnp.float32),
        'hpf_nuclei': jax.random.normal(ks[2], (n_hpfs, NN, HPF, HPF), jnp.float32),
        'hpf_nuclei_pre': jax.random.normal(ks[3], (n_hpfs, NN, HPF, HPF), jnp.float32),
        'hpf_hres_bounds': jnp.array([[0, 0, 32, 32], [32, 32, 64, 64],
                                      [0, 32, 32, 64], [32, 0, 64, 32]], jnp.int32),
        'hpf_roidx': jnp.array([0, 0, 1, 1], jnp.int32),
    }

    truth = []
    for i in range(B):
        kk = jax.random.split(ks[4 + i], 7)
        region_h = jax.random.randint(kk[0], (1, 1, Hh, Wh), 0, NR + 1, jnp.int32)
        nucleus_h = jax.random.randint(kk[1], (1, 1, Hh, Wh), 0, NN + 1, jnp.int32)
        junk_h = jax.random.randint(kk[2], (1, 1, Hh, Wh), 0, 2, jnp.int32)
        region_l = jax.random.randint(kk[3], (1, 1, Hl, Wl), 0, NR + 1, jnp.int32)
        other_l = jax.random.randint(kk[4], (1, 1, Hl, Wl), 0, 2, jnp.int32)
        truth.append({
            'highres_rgb': jax.random.uniform(kk[5], (1, 3, Hh, Wh), jnp.float32),
            'lowres_rgb': jax.random.uniform(kk[6], (1, 3, Hl, Wl), jnp.float32),
            'highres_mask': jnp.concatenate([region_h, nucleus_h, junk_h], axis=1),
            'lowres_mask': jnp.concatenate([region_l, other_l], axis=1),
            'roiname': f'roi_{i}',
            'idx': i,
        })

    evaluator = MuTILsEvaluatorPallas()
    all_stats = evaluator(inference, truth)
    jax.block_until_ready(evaluator.raw_outputs)

    # Validate against a numpy re-implementation of the torch module.
    ref_stats = reference_eval(inference, truth, evaluator)
    assert len(all_stats) == len(ref_stats) == B
    for got, ref in zip(all_stats, ref_stats):
        for k, v in ref.items():
            assert k in got, f"missing key {k}"
            assert np.isclose(got[k], v, rtol=0.0, atol=1e-3), (k, got[k], v)
        assert np.isfinite(got['roi-regions_OVERALL-pixel_count'])
        assert got['hpf-CTA-score_denom_pred'] >= 0.0
    print("KERNEL_OK")
</pallas_src>

<mosaic_0001>
module attributes {stable_mosaic.version = 11 : i64} {
  func.func @kernel(%arg0: i32, %arg1: i32, %arg2: memref<1x3x32x128xf32, #tpu.memory_space<vmem>>, %arg3: memref<1x3x32x128xf32, #tpu.memory_space<vmem>>) attributes {dimension_semantics = [#tpu.dimension_semantics<parallel>, #tpu.dimension_semantics<parallel>], iteration_bounds = array<i64: 2, 1>, scalar_prefetch = 0 : i64, scratch_operands = 0 : i64, tpu.core_type = #tpu.core_type<tc>, window_params = [{transform_indices = @transform_0, window_bounds = array<i64: 1, 3, 32, 128>}, {transform_indices = @transform_1, window_bounds = array<i64: 1, 3, 32, 128>}]} {
    %c0 = arith.constant 0 : index
    %c0_0 = arith.constant 0 : index
    %c0_1 = arith.constant 0 : index
    %c0_2 = arith.constant 0 : index
    %0 = vector.load %arg2[%c0, %c0_0, %c0_1, %c0_2] : memref<1x3x32x128xf32, #tpu.memory_space<vmem>>, vector<1x1x32x128xf32>
    %1 = vector.shape_cast %0 : vector<1x1x32x128xf32> to vector<32x128xf32>
    %cst = arith.constant 4.36681223 : f32
    %2 = vector.broadcast %cst : f32 to vector<32x128xf32>
    %3 = arith.mulf %1, %2 : vector<32x128xf32>
    %cst_3 = arith.constant -2.11790395 : f32
    %4 = vector.broadcast %cst_3 : f32 to vector<32x128xf32>
    %5 = arith.addf %3, %4 : vector<32x128xf32>
    %c0_4 = arith.constant 0 : index
    %c0_5 = arith.constant 0 : index
    %c0_6 = arith.constant 0 : index
    %c0_7 = arith.constant 0 : index
    %6 = vector.load %arg3[%c0_4, %c0_5, %c0_6, %c0_7] : memref<1x3x32x128xf32, #tpu.memory_space<vmem>>, vector<1x1x32x128xf32>
    %7 = vector.shape_cast %6 : vector<1x1x32x128xf32> to vector<32x128xf32>
    %8 = vector.shape_cast %5 : vector<32x128xf32> to vector<1x1x32x128xf32>
    tpu.vector_store %arg3[%c0_4, %c0_5, %c0_6, %c0_7], %8 {strides = array<i32>} : memref<1x3x32x128xf32, #tpu.memory_space<vmem>>, vector<1x1x32x128xf32>,
    %c0_8 = arith.constant 0 : index
    %c1 = arith.constant 1 : index
    %c0_9 = arith.constant 0 : index
    %c0_10 = arith.constant 0 : index
    %9 = vector.load %arg2[%c0_8, %c1, %c0_9, %c0_10] : memref<1x3x32x128xf32, #tpu.memory_space<vmem>>, vector<1x1x32x128xf32>
    %10 = vector.shape_cast %9 : vector<1x1x32x128xf32> to vector<32x128xf32>
    %cst_11 = arith.constant 4.46428585 : f32
    %11 = vector.broadcast %cst_11 : f32 to vector<32x128xf32>
    %12 = arith.mulf %10, %11 : vector<32x128xf32>
    %cst_12 = arith.constant -2.03571439 : f32
    %13 = vector.broadcast %cst_12 : f32 to vector<32x128xf32>
    %14 = arith.addf %12, %13 : vector<32x128xf32>
    %c0_13 = arith.constant 0 : index
    %c1_14 = arith.constant 1 : index
    %c0_15 = arith.constant 0 : index
    %c0_16 = arith.constant 0 : index
    %15 = vector.load %arg3[%c0_13, %c1_14, %c0_15, %c0_16] : memref<1x3x32x128xf32, #tpu.memory_space<vmem>>, vector<1x1x32x128xf32>
    %16 = vector.shape_cast %15 : vector<1x1x32x128xf32> to vector<32x128xf32>
    %17 = vector.shape_cast %14 : vector<32x128xf32> to vector<1x1x32x128xf32>
    tpu.vector_store %arg3[%c0_13, %c1_14, %c0_15, %c0_16], %17 {strides = array<i32>} : memref<1x3x32x128xf32, #tpu.memory_space<vmem>>, vector<1x1x32x128xf32>,
    %c0_17 = arith.constant 0 : index
    %c2 = arith.constant 2 : index
    %c0_18 = arith.constant 0 : index
    %c0_19 = arith.constant 0 : index
    %18 = vector.load %arg2[%c0_17, %c2, %c0_18, %c0_19] : memref<1x3x32x128xf32, #tpu.memory_space<vmem>>, vector<1x1x32x128xf32>
    %19 = vector.shape_cast %18 : vector<1x1x32x128xf32> to vector<32x128xf32>
    %cst_20 = arith.constant 4.44444466 : f32
    %20 = vector.broadcast %cst_20 : f32 to vector<32x128xf32>
    %21 = arith.mulf %19, %20 : vector<32x128xf32>
    %cst_21 = arith.constant -1.80444443 : f32
    %22 = vector.broadcast %cst_21 : f32 to vector<32x128xf32>
    %23 = arith.addf %21, %22 : vector<32x128xf32>
    %c0_22 = arith.constant 0 : index
    %c2_23 = arith.constant 2 : index
    %c0_24 = arith.constant 0 : index
    %c0_25 = arith.constant 0 : index
    %24 = vector.load %arg3[%c0_22, %c2_23, %c0_24, %c0_25] : memref<1x3x32x128xf32, #tpu.memory_space<vmem>>, vector<1x1x32x128xf32>
    %25 = vector.shape_cast %24 : vector<1x1x32x128xf32> to vector<32x128xf32>
    %26 = vector.shape_cast %23 : vector<32x128xf32> to vector<1x1x32x128xf32>
    tpu.vector_store %arg3[%c0_22, %c2_23, %c0_24, %c0_25], %26 {strides = array<i32>} : memref<1x3x32x128xf32, #tpu.memory_space<vmem>>, vector<1x1x32x128xf32>,
    return
  }
  func.func @transform_0(%arg0: i32, %arg1: i32) -> (i32, i32, i32, i32) {
    %c0_i32 = arith.constant 0 : i32
    %c0_i32_0 = arith.constant 0 : i32
    %c0_i32_1 = arith.constant 0 : i32
    return %arg0, %c0_i32, %arg1, %c0_i32_0 : i32, i32, i32, i32
  }
  func.func @transform_1(%arg0: i32, %arg1: i32) -> (i32, i32, i32, i32) {
    %c0_i32 = arith.constant 0 : i32
    %c0_i32_0 = arith.constant 0 : i32
    %c0_i32_1 = arith.constant 0 : i32
    return %arg0, %c0_i32, %arg1, %c0_i32_0 : i32, i32, i32, i32
  }
}

</mosaic_0001>

<llo_original>
// kernel: tpu_custom_call.1
$region0: #{tpu_custom_call.1}
  #allocation0 [shape = 'u32[]', space=smem, size = 0x4, offset = 0x4, fixed_abs, tag = 'smem constant byte address 0x4 - core index']
  #allocation1 [shape = 'u32[144,128]{1,0:T(1,128)}', space=vmem, size = 0x12000, scoped, tag = 'internal scratch']
  %s0 = inlined_call_operand.hbm [shape: f32[2,3,32,128], index: 0, kind: input, shape index: {}]
  %s1 = inlined_call_operand.hbm [shape: f32[2,3,32,128], index: 1, kind: output, shape index: {}]
  %s2 = sld [smem:[#allocation0]]
  $region41: #{tpu_custom_call.1} parent=0
    _
  %s4 = ssub.s32 1, %s2
  %s5 = scalar_select 0, %s4, %s2
  $region1: #{tpu_custom_call.1} parent=0
    #allocation2 [shape = 'u8[98304]{0}', space=vmem, size = 0x18000, scoped, tag = 'input window, operand 0']
    #allocation3 [shape = 's32[2]{0}', space=sflag, size = 0x8, scoped, tag = 'scoped memory for tpu_custom_call.1']
    #allocation4 [shape = 's32[2]{0}', space=sflag, size = 0x8, scoped, tag = 'scoped memory for tpu_custom_call.1']
    #allocation5 [shape = 'u8[98304]{0}', space=vmem, size = 0x18000, scoped, tag = 'output window, operand 0']
    %6 = vsyncpa [#allocation3], 0
    %s7 = scalar_lea.sflag [#allocation3], 1
    %8 = vsyncpa %s7, 0
    %9 = vsyncpa [#allocation4], 0
    %s10 = scalar_lea.sflag [#allocation4], 1
    %11 = vsyncpa %s10, 0
    loop: start=0, step=1, limit=4
    $region2: #{tpu_custom_call.1} parent=1 // loop_pre_header
      _
    $region3: #{tpu_custom_call.1} parent=1 // loop_header
      %s13 = sphi 0, %s17
      %p14 = scmp.ge.s32.totalorder %s13, 4
      %s20 = sphi 0, %s32
      %s21 = sphi 0, %s28
      %s22 = sphi 0, %s20
      %s23 = sphi 0, %s21
      %s24 = sphi 0, %s22
      %s25 = sphi 0, %s23
      %s37 = sphi 0, %s39
      %s40 = sphi 0, %s37
      %s41 = sphi 0, %s40
      %s57 = sphi 0, %s41
      %s65 = sphi 0, %s67
      %s68 = sphi 0, %s65
      %s69 = sphi 0, %s68
      %s85 = sphi 0, %s69
    $region4: #{tpu_custom_call.1} parent=1 // loop_header_branch
      %16 = sbr.rel (%p14) target = $region8
    $region5: #{tpu_custom_call.1} parent=1 // loop_body
      %s18 = ssub.s32 %s13, 1
      %s19 = ssub.s32 %s13, 2
      %s26 = sadd.s32 1, %s21
      %p27 = scmp.ge.s32.totalorder %s26, 1
      %s28 = scalar_select %p27, 0, %s26
      %s29 = sadd.s32 1, %s20
      %s30 = scalar_select %p27, %s29, %s20
      %p31 = scmp.ge.s32.totalorder %s30, 2
      %s32 = scalar_select %p31, 0, %s30
      %s33 = ssub.s32 %s20, %s32
      %s34 = ssub.s32 %s21, %s28
      %s35 = sor.u32 %s33, %s34
      %p36 = scmp.eq.s32.totalorder %s35, 0
      %s38 = sadd.s32 %s37, 1
      %s39 = scalar_select %p36, %s37, %s38
      %p42 = pneg %p36
      %p43 = scmp.eq.s32.totalorder %s13, 1
      %p44 = por %p42, %p43
      %p45 = scmp.ne.s32.totalorder %s37, %s40
      %p46 = scmp.eq.s32.totalorder %s13, 0
      %p47 = por %p45, %p46
      %p48 = scmp.ne.s32.totalorder %s37, %s40
      %p49 = scmp.eq.s32.totalorder %s18, 1
      %p50 = por %p48, %p49
      %p51 = scmp.ne.s32.totalorder %s40, %s41
      %p52 = scmp.eq.s32.totalorder %s18, 0
      %p53 = por %p51, %p52
      %p54 = scmp.ne.s32.totalorder %s40, %s41
      %p55 = scmp.eq.s32.totalorder %s19, 1
      %p56 = por %p54, %p55
      %p58 = scmp.ne.s32.totalorder %s41, %s57
      %p59 = scmp.eq.s32.totalorder %s19, 0
      %p60 = por %p58, %p59
      %s61 = ssub.s32 %s20, %s32
      %s62 = ssub.s32 %s21, %s28
      %s63 = sor.u32 %s61, %s62
      %p64 = scmp.eq.s32.totalorder %s63, 0
      %s66 = sadd.s32 %s65, 1
      %s67 = scalar_select %p64, %s65, %s66
      %p70 = pneg %p64
      %p71 = scmp.eq.s32.totalorder %s13, 1
      %p72 = por %p70, %p71
      %p73 = scmp.ne.s32.totalorder %s65, %s68
      %p74 = scmp.eq.s32.totalorder %s13, 0
      %p75 = por %p73, %p74
      %p76 = scmp.ne.s32.totalorder %s65, %s68
      %p77 = scmp.eq.s32.totalorder %s18, 1
      %p78 = por %p76, %p77
      %p79 = scmp.ne.s32.totalorder %s68, %s69
      %p80 = scmp.eq.s32.totalorder %s18, 0
      %p81 = por %p79, %p80
      %p82 = scmp.ne.s32.totalorder %s68, %s69
      %p83 = scmp.eq.s32.totalorder %s19, 1
      %p84 = por %p82, %p83
      %p86 = scmp.ne.s32.totalorder %s69, %s85
      %p87 = scmp.eq.s32.totalorder %s19, 0
      %p88 = por %p86, %p87
      %p89 = scmp.le.s32.totalorder 1, %s13
      %p90 = scmp.lt.s32.totalorder %s13, 3
      %p91 = pnand %p89, %p90
      %p92 = pneg %p91
      // Predicated region
      $region9: #{tpu_custom_call.1} parent=5 // pred_check
        _
      $region10: #{tpu_custom_call.1} parent=5 // pred_check_branch
        %94 = sbr.rel (%p91) target = $region12
      $region11: #{tpu_custom_call.1} parent=5 // pred_region
        %s95 = ssub.s32 %s13, 1
      $region12: #{tpu_custom_call.1} parent=5 // pred_fallthru
        _
      %p96 = scmp.lt.s32.totalorder %s13, 2
      // Predicated region
      $region13: #{tpu_custom_call.1} parent=5 // pred_check
        %p97 = pneg %p96
      $region14: #{tpu_custom_call.1} parent=5 // pred_check_branch
        %99 = sbr.rel (%p97) target = $region16
      $region15: #{tpu_custom_call.1} parent=5 // pred_region
        // Predicated region
        $region17: #{tpu_custom_call.1} parent=15 // pred_check
          %p100 = pneg %p47
        $region18: #{tpu_custom_call.1} parent=15 // pred_check_branch
          %102 = sbr.rel (%p100) target = $region20
        $region19: #{tpu_custom_call.1} parent=15 // pred_region
          %s103 = sand.u32 %s37, 1
          %s104 = scalar_lea.sflag [#allocation3], %s103
          %s105 = sand.u32 %s37, 1
          %s106 = smul.addr %s105, 96
          %s107 = scalar_lea.vmem [#allocation2], %s106
          %s108 = smul.u32 4, %s21
          %s110 = ssub.s32 1536, 1536
          %111 = vsyncadd %s104, %s110
          %s112 = smul.addr %s20, 12
          %s113 = sadd.s32 %s108, %s112
          %s114 = smul.addr %s113, 128
          %s115 = scalar_lea.hbm %s0, %s114
          %s116 = sshll.u32 %s107, 4
          %s117 = int_to_ptr.vmem [resolvable:$true] %s116
          %122 = dma.hbm_to_vmem [thread:$0]  %s115, 1536, %s117, %s104, 128, 128, 8
        $region20: #{tpu_custom_call.1} parent=15 // pred_fallthru
          _
      $region16: #{tpu_custom_call.1} parent=5 // pred_fallthru
        _
      %p123 = scmp.le.s32.totalorder 1, %s13
      %p124 = scmp.lt.s32.totalorder %s13, 3
      %p125 = pnand %p123, %p124
      %p126 = pneg %p125
      // Predicated region
      $region21: #{tpu_custom_call.1} parent=5 // pred_check
        _
      $region22: #{tpu_custom_call.1} parent=5 // pred_check_branch
        %128 = sbr.rel (%p125) target = $region24
      $region23: #{tpu_custom_call.1} parent=5 // pred_region
        %s129 = ssub.s32 %s13, 1
        %s130 = sand.u32 %s40, 1
        %s131 = scalar_lea.sflag [#allocation3], %s130
        %s132 = sand.u32 %s40, 1
        %s133 = smul.addr %s132, 96
        %s134 = scalar_lea.vmem [#allocation2], %s133
        // Predicated region
        $region25: #{tpu_custom_call.1} parent=23 // pred_check
          %p135 = pneg %p53
        $region26: #{tpu_custom_call.1} parent=23 // pred_check_branch
          %137 = sbr.rel (%p135) target = $region28
        $region27: #{tpu_custom_call.1} parent=23 // pred_region
          %138 = dma.done %s131, 1536
        $region28: #{tpu_custom_call.1} parent=23 // pred_fallthru
          _
        %s139 = sand.u32 %s40, 1
        %s140 = scalar_lea.sflag [#allocation3], %s139
        %s141 = sand.u32 %s40, 1
        %s142 = smul.addr %s141, 96
        %s143 = scalar_lea.vmem [#allocation2], %s142
        %p144 = pneg %p53
        %p145 = pneg %p50
        %p146 = pneg %p81
        %p147 = pneg %p78
        %s148 = sand.u32 %s68, 1
        %s149 = scalar_lea.sflag [#allocation4], %s148
        %s150 = sand.u32 %s68, 1
        %s151 = smul.addr %s150, 96
        %s152 = scalar_lea.vmem [#allocation5], %s151
        %s153 = smul.u32 4, %s23
        %s154 = smul.u32 4, %s23
        %v155 = vld [vmem:[%s134] sm:$0xff]
        %v156 = vld [vmem:[%s134 + $0x8] sm:$0xff]
        %v157 = vld [vmem:[%s134 + $0x10] sm:$0xff]
        %v158 = vld [vmem:[%s134 + $0x18] sm:$0xff]
        %v159 = vmul.f32 %v155, 4.366812
        %v160 = vmul.f32 %v156, 4.366812
        %v161 = vmul.f32 %v157, 4.366812
        %v162 = vmul.f32 %v158, 4.366812
        %v163 = vadd.f32 %v159, -2.117904
        %v164 = vadd.f32 %v160, -2.117904
        %v165 = vadd.f32 %v161, -2.117904
        %v166 = vadd.f32 %v162, -2.117904
        %167 = vst [vmem:[%s152] sm:$0xff] %v163
        %168 = vst [vmem:[%s152 + $0x8] sm:$0xff] %v164
        %169 = vst [vmem:[%s152 + $0x10] sm:$0xff] %v165
        %170 = vst [vmem:[%s152 + $0x18] sm:$0xff] %v166
        %s171 = scalar_lea.vmem %s134, 32 [#allocation2]
        %v172 = vld [vmem:[%s171] sm:$0xff]
        %v173 = vld [vmem:[%s171 + $0x8] sm:$0xff]
        %v174 = vld [vmem:[%s171 + $0x10] sm:$0xff]
        %v175 = vld [vmem:[%s171 + $0x18] sm:$0xff]
        %v176 = vmul.f32 %v172, 4.464286
        %v177 = vmul.f32 %v173, 4.464286
        %v178 = vmul.f32 %v174, 4.464286
        %v179 = vmul.f32 %v175, 4.464286
        %v180 = vadd.f32 %v176, -2.0357144
        %v181 = vadd.f32 %v177, -2.0357144
        %v182 = vadd.f32 %v178, -2.0357144
        %v183 = vadd.f32 %v179, -2.0357144
        %s184 = scalar_lea.vmem %s152, 32 [#allocation5]
        %185 = vst [vmem:[%s184] sm:$0xff] %v180
        %186 = vst [vmem:[%s184 + $0x8] sm:$0xff] %v181
        %187 = vst [vmem:[%s184 + $0x10] sm:$0xff] %v182
        %188 = vst [vmem:[%s184 + $0x18] sm:$0xff] %v183
        %s189 = scalar_lea.vmem %s134, 64 [#allocation2]
        %v190 = vld [vmem:[%s189] sm:$0xff]
        %v191 = vld [vmem:[%s189 + $0x8] sm:$0xff]
        %v192 = vld [vmem:[%s189 + $0x10] sm:$0xff]
        %v193 = vld [vmem:[%s189 + $0x18] sm:$0xff]
        %v194 = vmul.f32 %v190, 4.4444447
        %v195 = vmul.f32 %v191, 4.4444447
        %v196 = vmul.f32 %v192, 4.4444447
        %v197 = vmul.f32 %v193, 4.4444447
        %v198 = vadd.f32 %v194, -1.8044444
        %v199 = vadd.f32 %v195, -1.8044444
        %v200 = vadd.f32 %v196, -1.8044444
        %v201 = vadd.f32 %v197, -1.8044444
        %s202 = scalar_lea.vmem %s152, 64 [#allocation5]
        %203 = vst [vmem:[%s202] sm:$0xff] %v198
        %204 = vst [vmem:[%s202 + $0x8] sm:$0xff] %v199
        %205 = vst [vmem:[%s202 + $0x10] sm:$0xff] %v200
        %206 = vst [vmem:[%s202 + $0x18] sm:$0xff] %v201
        %s207 = sand.u32 %s68, 1
        %s208 = scalar_lea.sflag [#allocation4], %s207
        %s209 = sand.u32 %s68, 1
        %s210 = smul.addr %s209, 96
        %s211 = scalar_lea.vmem [#allocation5], %s210
        // Predicated region
        $region29: #{tpu_custom_call.1} parent=23 // pred_check
          %p212 = pneg %p78
        $region30: #{tpu_custom_call.1} parent=23 // pred_check_branch
          %214 = sbr.rel (%p212) target = $region32
        $region31: #{tpu_custom_call.1} parent=23 // pred_region
          %s215 = smul.u32 4, %s23
          %s217 = ssub.s32 1536, 1536
          %218 = vsyncadd %s208, %s217
          %s219 = smul.addr %s22, 12
          %s220 = sadd.s32 %s215, %s219
          %s221 = smul.addr %s220, 128
          %s222 = scalar_lea.hbm %s1, %s221
          %s223 = sshll.u32 %s211, 4
          %s224 = int_to_ptr.vmem [resolvable:$true] %s223
          %229 = dma.vmem_to_hbm [thread:$0]  %s224, 1536, %s222, %s208, 128, 128, 8
        $region32: #{tpu_custom_call.1} parent=23 // pred_fallthru
          _
      $region24: #{tpu_custom_call.1} parent=5 // pred_fallthru
        _
      %p230 = scmp.le.s32.totalorder 2, %s13
      // Predicated region
      $region33: #{tpu_custom_call.1} parent=5 // pred_check
        %p231 = pneg %p230
      $region34: #{tpu_custom_call.1} parent=5 // pred_check_branch
        %233 = sbr.rel (%p231) target = $region36
      $region35: #{tpu_custom_call.1} parent=5 // pred_region
        %s234 = ssub.s32 %s13, 2
        // Predicated region
        $region37: #{tpu_custom_call.1} parent=35 // pred_check
          %p235 = pneg %p84
        $region38: #{tpu_custom_call.1} parent=35 // pred_check_branch
          %237 = sbr.rel (%p235) target = $region40
        $region39: #{tpu_custom_call.1} parent=35 // pred_region
          %s238 = sand.u32 %s69, 1
          %s239 = scalar_lea.sflag [#allocation4], %s238
          %s240 = sand.u32 %s69, 1
          %s241 = smul.addr %s240, 96
          %s242 = scalar_lea.vmem [#allocation5], %s241
          %243 = dma.done %s239, 1536
        $region40: #{tpu_custom_call.1} parent=35 // pred_fallthru
          _
      $region36: #{tpu_custom_call.1} parent=5 // pred_fallthru
        _
    $region6: #{tpu_custom_call.1} parent=1 // loop_footer
      %s17 = sadd.s32 1, %s13
    $region7: #{tpu_custom_call.1} parent=1 // loop_footer_branch
      %12 = sbr.rel target = $region3
    $region8: #{tpu_custom_call.1} parent=1 // loop_exit
      _
    %244 = vsyncpa [#allocation3], 1
    %s245 = scalar_lea.sflag [#allocation3], 1
    %246 = vsyncpa %s245, 1
    %247 = vsyncpa [#allocation4], 1
    %s248 = scalar_lea.sflag [#allocation4], 1
    %249 = vsyncpa %s248, 1

</llo_original>
